<compile_context>
chip_gen: v7x
topology: tpu7x:2x2x1
jax: 0.10.0
libtpu: 0.0.40
codegen_flags: <defaults>
</compile_context>

<pallas_src>
import functools

import jax
import jax.numpy as jnp
from jax.experimental import pallas as pl
from jax.experimental.pallas import tpu as pltpu

EPS = 1e-5

# Row indices into the packed (1, C)-vector slab.
_G0, _BE0 = 0, 1
_B1, _G1, _BE1 = 2, 3, 4
_B2, _G2, _BE2 = 5, 6, 7
_B3, _G3, _BE3 = 8, 9, 10
_B4, _G4, _BE4 = 11, 12, 13
_B5 = 14
_NUM_VECS = 15


def dqn_kernel(x_ref, vec_ref, w1_ref, w2_ref, w3_ref, w4_ref, w5_ref, o_ref,
               *, in_pad, out_pad):
    x = x_ref[...]                                   # (B, in_pad) f32
    inv_n = 1.0 / x.shape[0]

    def vec(i, width):
        # Static slice off the packed vector slab — no runtime cost.
        return vec_ref[i:i + 1, :width]              # (1, width) f32

    def bn(h, gi, bi, width):
        # Training-mode BatchNorm1d: batch mean + biased variance, computed as
        # cross-sublane XLU reduces (MXU stays free for the layer dots).
        mean = jnp.sum(h, axis=0, keepdims=True) * inv_n
        centered = h - mean
        var = jnp.sum(centered * centered, axis=0, keepdims=True) * inv_n
        return centered * jax.lax.rsqrt(var + EPS) * vec(gi, width) + vec(bi, width)

    def linear(h, w_ref, bi, width):
        # bf16 operands on the MXU, f32 accumulation; bias add in f32.
        return jnp.dot(h.astype(jnp.bfloat16), w_ref[...],
                       preferred_element_type=jnp.float32) + vec(bi, width)

    # layer1: BN(inputs) -> Linear(inputs,256) -> BN -> ReLU
    h = bn(x, _G0, _BE0, in_pad)
    h = linear(h, w1_ref, _B1, 256)
    h = jnp.maximum(bn(h, _G1, _BE1, 256), 0.0)

    # layer2: Linear(256,256) -> BN -> ReLU
    h = linear(h, w2_ref, _B2, 256)
    h = jnp.maximum(bn(h, _G2, _BE2, 256), 0.0)

    # layer3: Linear(256,128) -> BN -> ReLU
    h = linear(h, w3_ref, _B3, 128)
    h = jnp.maximum(bn(h, _G3, _BE3, 128), 0.0)

    # layer4: Linear(128,64->padded 128) -> BN -> ReLU (padded cols stay 0)
    h = linear(h, w4_ref, _B4, 128)
    h = jnp.maximum(bn(h, _G4, _BE4, 128), 0.0)

    # layer5: Linear(64->padded 128, out_pad) -> ReLU (lane-dense store)
    h = linear(h, w5_ref, _B5, out_pad)
    o_ref[...] = jnp.maximum(h, 0.0)


def _round_up(v, m):
    return ((v + m - 1) // m) * m


def prepare_params(params, inputs, outputs):
    """One-time param prep: zero-pad to lane-dense widths, cast weights to bf16,
    pack all small (1, C) vectors into a single f32 slab. Call ONCE, outside the
    per-step forward."""
    in_pad = _round_up(inputs, 128)
    out_pad = _round_up(outputs, 128)
    h4_pad = 128  # layer4's 64-wide output padded to a full lane tile

    def pad_cols(v, width):
        return jnp.pad(v, ((0, 0), (0, width - v.shape[1])))

    w1 = jnp.pad(params["w1"], ((0, in_pad - inputs), (0, 0)))              # (in_pad, 256)
    w2 = params["w2"]                                                        # (256, 256)
    w3 = params["w3"]                                                        # (256, 128)
    w4 = pad_cols(params["w4"], h4_pad)                                      # (128, 128)
    w5 = jnp.pad(params["w5"],
                 ((0, h4_pad - params["w5"].shape[0]), (0, out_pad - outputs)))  # (128, out_pad)

    vecs = [
        pad_cols(params["g0"], in_pad), pad_cols(params["be0"], in_pad),
        params["b1"], params["g1"], params["be1"],
        params["b2"], params["g2"], params["be2"],
        params["b3"], params["g3"], params["be3"],
        pad_cols(params["b4"], h4_pad), pad_cols(params["g4"], h4_pad),
        pad_cols(params["be4"], h4_pad),
        pad_cols(params["b5"], out_pad),
    ]
    assert len(vecs) == _NUM_VECS
    slab_w = max(v.shape[1] for v in vecs)
    vec_slab = jnp.concatenate([pad_cols(v, slab_w) for v in vecs], axis=0)  # (15, slab_w) f32

    prepared = {
        "vec": vec_slab,
        "w1": w1.astype(jnp.bfloat16),
        "w2": w2.astype(jnp.bfloat16),
        "w3": w3.astype(jnp.bfloat16),
        "w4": w4.astype(jnp.bfloat16),
        "w5": w5.astype(jnp.bfloat16),
    }
    return prepared, in_pad, out_pad


@functools.partial(jax.jit, static_argnames=("outputs", "in_pad", "out_pad"))
def dqn_forward(x, prepared, outputs, in_pad, out_pad):
    n, d = x.shape
    x_p = jnp.pad(x, ((0, 0), (0, in_pad - d))) if d != in_pad else x

    kernel = functools.partial(dqn_kernel, in_pad=in_pad, out_pad=out_pad)
    vmem_spec = pl.BlockSpec(memory_space=pltpu.MemorySpace.VMEM)
    out_padded = pl.pallas_call(
        kernel,
        out_shape=jax.ShapeDtypeStruct((n, out_pad), jnp.float32),
        in_specs=[vmem_spec] * 7,
        out_specs=vmem_spec,
        compiler_params=pltpu.CompilerParams(vmem_limit_bytes=4 << 20),
    )(x_p, prepared["vec"], prepared["w1"], prepared["w2"],
      prepared["w3"], prepared["w4"], prepared["w5"])
    return out_padded[:, :outputs]


def make_params(key, inputs, outputs):
    """Deterministic synthetic parameters with the shapes implied by __init__.

    Linear weights are stored pre-transposed as (in, out) so the kernel does
    x @ W. BN gamma/beta and biases are (1, C) rows, all f32; prepare_params()
    handles padding / bf16 casting once."""
    dims = [(inputs, 256), (256, 256), (256, 128), (128, 64), (64, outputs)]
    params = {}
    params["g0"] = jnp.ones((1, inputs), jnp.float32)
    params["be0"] = jnp.zeros((1, inputs), jnp.float32)
    for i, (din, dout) in enumerate(dims, start=1):
        key, kw, kb = jax.random.split(key, 3)
        scale = 1.0 / jnp.sqrt(jnp.float32(din))
        params[f"w{i}"] = jax.random.uniform(
            kw, (din, dout), jnp.float32, minval=-scale, maxval=scale)
        params[f"b{i}"] = jax.random.uniform(
            kb, (1, dout), jnp.float32, minval=-scale, maxval=scale)
        if i <= 4:  # layers 1..4 have a BatchNorm after the Linear
            params[f"g{i}"] = jnp.ones((1, dout), jnp.float32)
            params[f"be{i}"] = jnp.zeros((1, dout), jnp.float32)
    return params


def reference_forward(x, params, matmul_dtype=jnp.float32):
    """Pure-JAX reference mirroring the PyTorch training-mode forward.

    matmul_dtype=jnp.bfloat16 reproduces the kernel's MXU numeric path
    (bf16 operands, f32 accumulation); jnp.float32 is the exact PyTorch math."""
    def bn(h, g, b):
        m = jnp.mean(h, axis=0, keepdims=True)
        v = jnp.mean((h - m) ** 2, axis=0, keepdims=True)
        return (h - m) / jnp.sqrt(v + EPS) * g + b

    def lin(h, w, b):
        return jnp.dot(h.astype(matmul_dtype), w.astype(matmul_dtype),
                       preferred_element_type=jnp.float32) + b

    h = bn(x, params["g0"], params["be0"])
    h = jnp.maximum(bn(lin(h, params["w1"], params["b1"]), params["g1"], params["be1"]), 0.0)
    h = jnp.maximum(bn(lin(h, params["w2"], params["b2"]), params["g2"], params["be2"]), 0.0)
    h = jnp.maximum(bn(lin(h, params["w3"], params["b3"]), params["g3"], params["be3"]), 0.0)
    h = jnp.maximum(bn(lin(h, params["w4"], params["b4"]), params["g4"], params["be4"]), 0.0)
    return jnp.maximum(lin(h, params["w5"], params["b5"]), 0.0)


if __name__ == "__main__":
    INPUTS, OUTPUTS, BATCH = 32, 8, 16

    key = jax.random.PRNGKey(0)
    key, kx = jax.random.split(key)
    x = jax.random.normal(kx, (BATCH, INPUTS), jnp.float32)
    params = make_params(key, INPUTS, OUTPUTS)

    # One-time (outside the per-call jit): pad + bf16-cast + pack vectors.
    prepared, in_pad, out_pad = prepare_params(params, INPUTS, OUTPUTS)
    prepared = jax.tree_util.tree_map(jax.block_until_ready, prepared)

    out = jax.block_until_ready(
        dqn_forward(x, prepared, outputs=OUTPUTS, in_pad=in_pad, out_pad=out_pad))
    assert out.shape == (BATCH, OUTPUTS)

    # Tight check against a reference that mirrors the kernel's bf16-matmul /
    # f32-BN numeric path.
    ref_bf16 = reference_forward(x, params, matmul_dtype=jnp.bfloat16)
    assert jnp.allclose(out, ref_bf16, atol=2e-3, rtol=2e-3), "mismatch vs bf16-path reference"

    # Loose sanity check against the exact f32 (PyTorch-equivalent) math; the
    # only difference is bf16 quantization of matmul operands across 5 layers.
    ref_f32 = reference_forward(x, params, matmul_dtype=jnp.float32)
    assert jnp.allclose(out, ref_f32, atol=0.25, rtol=0.25), "mismatch vs f32 reference"

    print("KERNEL_OK")
</pallas_src>

<mosaic_0001>
module attributes {stable_mosaic.version = 11 : i64} {
  func.func @dqn_kernel(%arg0: memref<16x128xf32, #tpu.memory_space<vmem>>, %arg1: memref<15x256xf32, #tpu.memory_space<vmem>>, %arg2: memref<128x256xbf16, #tpu.memory_space<vmem>>, %arg3: memref<256x256xbf16, #tpu.memory_space<vmem>>, %arg4: memref<256x128xbf16, #tpu.memory_space<vmem>>, %arg5: memref<128x128xbf16, #tpu.memory_space<vmem>>, %arg6: memref<128x128xbf16, #tpu.memory_space<vmem>>, %arg7: memref<16x128xf32, #tpu.memory_space<vmem>>) attributes {dimension_semantics = [], scalar_prefetch = 0 : i64, scratch_operands = 0 : i64, tpu.core_type = #tpu.core_type<tc>} {
    %c0 = arith.constant 0 : index
    %c0_0 = arith.constant 0 : index
    %0 = vector.load %arg0[%c0, %c0_0] : memref<16x128xf32, #tpu.memory_space<vmem>>, vector<16x128xf32>
    %cst = arith.constant dense<0.000000e+00> : vector<128xf32>
    %1 = vector.multi_reduction <add>, %0, %cst [0] : vector<16x128xf32> to vector<128xf32>
    %2 = vector.shape_cast %1 : vector<128xf32> to vector<1x128xf32>
    %cst_1 = arith.constant 6.250000e-02 : f32
    %3 = vector.broadcast %cst_1 : f32 to vector<1x128xf32>
    %4 = arith.mulf %2, %3 : vector<1x128xf32>
    %5 = vector.broadcast %4 : vector<1x128xf32> to vector<16x128xf32>
    %6 = arith.subf %0, %5 : vector<16x128xf32>
    %7 = arith.mulf %6, %6 : vector<16x128xf32>
    %cst_2 = arith.constant dense<0.000000e+00> : vector<128xf32>
    %8 = vector.multi_reduction <add>, %7, %cst_2 [0] : vector<16x128xf32> to vector<128xf32>
    %9 = vector.shape_cast %8 : vector<128xf32> to vector<1x128xf32>
    %cst_3 = arith.constant 6.250000e-02 : f32
    %10 = vector.broadcast %cst_3 : f32 to vector<1x128xf32>
    %11 = arith.mulf %9, %10 : vector<1x128xf32>
    %cst_4 = arith.constant 9.99999974E-6 : f32
    %12 = vector.broadcast %cst_4 : f32 to vector<1x128xf32>
    %13 = arith.addf %11, %12 : vector<1x128xf32>
    %14 = math.rsqrt %13 : vector<1x128xf32>
    %15 = vector.broadcast %14 : vector<1x128xf32> to vector<16x128xf32>
    %16 = arith.mulf %6, %15 : vector<16x128xf32>
    %c0_5 = arith.constant 0 : index
    %c0_6 = arith.constant 0 : index
    %17 = vector.load %arg1[%c0_5, %c0_6] : memref<15x256xf32, #tpu.memory_space<vmem>>, vector<1x128xf32>
    %18 = vector.broadcast %17 : vector<1x128xf32> to vector<16x128xf32>
    %19 = arith.mulf %16, %18 : vector<16x128xf32>
    %c1 = arith.constant 1 : index
    %c0_7 = arith.constant 0 : index
    %20 = vector.load %arg1[%c1, %c0_7] : memref<15x256xf32, #tpu.memory_space<vmem>>, vector<1x128xf32>
    %21 = vector.broadcast %20 : vector<1x128xf32> to vector<16x128xf32>
    %22 = arith.addf %19, %21 : vector<16x128xf32>
    %23 = arith.truncf %22 : vector<16x128xf32> to vector<16x128xbf16>
    %c0_8 = arith.constant 0 : index
    %c0_9 = arith.constant 0 : index
    %24 = vector.load %arg2[%c0_8, %c0_9] : memref<128x256xbf16, #tpu.memory_space<vmem>>, vector<128x256xbf16>
    %cst_10 = arith.constant dense<0.000000e+00> : vector<16x256xf32>
    %25 = tpu.matmul %23, %24, %cst_10 {dimension_numbers = #tpu.dot_dimension_numbers<[1], [0], [0], [1], [0, 0, 1, 1], [], []>} : vector<16x128xbf16>, vector<128x256xbf16>, vector<16x256xf32> -> vector<16x256xf32>
    %c2 = arith.constant 2 : index
    %c0_11 = arith.constant 0 : index
    %26 = vector.load %arg1[%c2, %c0_11] : memref<15x256xf32, #tpu.memory_space<vmem>>, vector<1x256xf32>
    %27 = vector.broadcast %26 : vector<1x256xf32> to vector<16x256xf32>
    %28 = arith.addf %25, %27 : vector<16x256xf32>
    %cst_12 = arith.constant dense<0.000000e+00> : vector<256xf32>
    %29 = vector.multi_reduction <add>, %28, %cst_12 [0] : vector<16x256xf32> to vector<256xf32>
    %30 = vector.shape_cast %29 : vector<256xf32> to vector<1x256xf32>
    %cst_13 = arith.constant 6.250000e-02 : f32
    %31 = vector.broadcast %cst_13 : f32 to vector<1x256xf32>
    %32 = arith.mulf %30, %31 : vector<1x256xf32>
    %33 = vector.broadcast %32 : vector<1x256xf32> to vector<16x256xf32>
    %34 = arith.subf %28, %33 : vector<16x256xf32>
    %35 = arith.mulf %34, %34 : vector<16x256xf32>
    %cst_14 = arith.constant dense<0.000000e+00> : vector<256xf32>
    %36 = vector.multi_reduction <add>, %35, %cst_14 [0] : vector<16x256xf32> to vector<256xf32>
    %37 = vector.shape_cast %36 : vector<256xf32> to vector<1x256xf32>
    %cst_15 = arith.constant 6.250000e-02 : f32
    %38 = vector.broadcast %cst_15 : f32 to vector<1x256xf32>
    %39 = arith.mulf %37, %38 : vector<1x256xf32>
    %cst_16 = arith.constant 9.99999974E-6 : f32
    %40 = vector.broadcast %cst_16 : f32 to vector<1x256xf32>
    %41 = arith.addf %39, %40 : vector<1x256xf32>
    %42 = math.rsqrt %41 : vector<1x256xf32>
    %43 = vector.broadcast %42 : vector<1x256xf32> to vector<16x256xf32>
    %44 = arith.mulf %34, %43 : vector<16x256xf32>
    %c3 = arith.constant 3 : index
    %c0_17 = arith.constant 0 : index
    %45 = vector.load %arg1[%c3, %c0_17] : memref<15x256xf32, #tpu.memory_space<vmem>>, vector<1x256xf32>
    %46 = vector.broadcast %45 : vector<1x256xf32> to vector<16x256xf32>
    %47 = arith.mulf %44, %46 : vector<16x256xf32>
    %c4 = arith.constant 4 : index
    %c0_18 = arith.constant 0 : index
    %48 = vector.load %arg1[%c4, %c0_18] : memref<15x256xf32, #tpu.memory_space<vmem>>, vector<1x256xf32>
    %49 = vector.broadcast %48 : vector<1x256xf32> to vector<16x256xf32>
    %50 = arith.addf %47, %49 : vector<16x256xf32>
    %cst_19 = arith.constant 0.000000e+00 : f32
    %51 = vector.broadcast %cst_19 : f32 to vector<16x256xf32>
    %52 = arith.maximumf %50, %51 : vector<16x256xf32>
    %53 = arith.truncf %52 : vector<16x256xf32> to vector<16x256xbf16>
    %c0_20 = arith.constant 0 : index
    %c0_21 = arith.constant 0 : index
    %54 = vector.load %arg3[%c0_20, %c0_21] : memref<256x256xbf16, #tpu.memory_space<vmem>>, vector<256x256xbf16>
    %cst_22 = arith.constant dense<0.000000e+00> : vector<16x256xf32>
    %55 = tpu.matmul %53, %54, %cst_22 {dimension_numbers = #tpu.dot_dimension_numbers<[1], [0], [0], [1], [0, 0, 1, 1], [], []>} : vector<16x256xbf16>, vector<256x256xbf16>, vector<16x256xf32> -> vector<16x256xf32>
    %c5 = arith.constant 5 : index
    %c0_23 = arith.constant 0 : index
    %56 = vector.load %arg1[%c5, %c0_23] : memref<15x256xf32, #tpu.memory_space<vmem>>, vector<1x256xf32>
    %57 = vector.broadcast %56 : vector<1x256xf32> to vector<16x256xf32>
    %58 = arith.addf %55, %57 : vector<16x256xf32>
    %cst_24 = arith.constant dense<0.000000e+00> : vector<256xf32>
    %59 = vector.multi_reduction <add>, %58, %cst_24 [0] : vector<16x256xf32> to vector<256xf32>
    %60 = vector.shape_cast %59 : vector<256xf32> to vector<1x256xf32>
    %cst_25 = arith.constant 6.250000e-02 : f32
    %61 = vector.broadcast %cst_25 : f32 to vector<1x256xf32>
    %62 = arith.mulf %60, %61 : vector<1x256xf32>
    %63 = vector.broadcast %62 : vector<1x256xf32> to vector<16x256xf32>
    %64 = arith.subf %58, %63 : vector<16x256xf32>
    %65 = arith.mulf %64, %64 : vector<16x256xf32>
    %cst_26 = arith.constant dense<0.000000e+00> : vector<256xf32>
    %66 = vector.multi_reduction <add>, %65, %cst_26 [0] : vector<16x256xf32> to vector<256xf32>
    %67 = vector.shape_cast %66 : vector<256xf32> to vector<1x256xf32>
    %cst_27 = arith.constant 6.250000e-02 : f32
    %68 = vector.broadcast %cst_27 : f32 to vector<1x256xf32>
    %69 = arith.mulf %67, %68 : vector<1x256xf32>
    %cst_28 = arith.constant 9.99999974E-6 : f32
    %70 = vector.broadcast %cst_28 : f32 to vector<1x256xf32>
    %71 = arith.addf %69, %70 : vector<1x256xf32>
    %72 = math.rsqrt %71 : vector<1x256xf32>
    %73 = vector.broadcast %72 : vector<1x256xf32> to vector<16x256xf32>
    %74 = arith.mulf %64, %73 : vector<16x256xf32>
    %c6 = arith.constant 6 : index
    %c0_29 = arith.constant 0 : index
    %75 = vector.load %arg1[%c6, %c0_29] : memref<15x256xf32, #tpu.memory_space<vmem>>, vector<1x256xf32>
    %76 = vector.broadcast %75 : vector<1x256xf32> to vector<16x256xf32>
    %77 = arith.mulf %74, %76 : vector<16x256xf32>
    %c7 = arith.constant 7 : index
    %c0_30 = arith.constant 0 : index
    %78 = vector.load %arg1[%c7, %c0_30] : memref<15x256xf32, #tpu.memory_space<vmem>>, vector<1x256xf32>
    %79 = vector.broadcast %78 : vector<1x256xf32> to vector<16x256xf32>
    %80 = arith.addf %77, %79 : vector<16x256xf32>
    %cst_31 = arith.constant 0.000000e+00 : f32
    %81 = vector.broadcast %cst_31 : f32 to vector<16x256xf32>
    %82 = arith.maximumf %80, %81 : vector<16x256xf32>
    %83 = arith.truncf %82 : vector<16x256xf32> to vector<16x256xbf16>
    %c0_32 = arith.constant 0 : index
    %c0_33 = arith.constant 0 : index
    %84 = vector.load %arg4[%c0_32, %c0_33] : memref<256x128xbf16, #tpu.memory_space<vmem>>, vector<256x128xbf16>
    %cst_34 = arith.constant dense<0.000000e+00> : vector<16x128xf32>
    %85 = tpu.matmul %83, %84, %cst_34 {dimension_numbers = #tpu.dot_dimension_numbers<[1], [0], [0], [1], [0, 0, 1, 1], [], []>} : vector<16x256xbf16>, vector<256x128xbf16>, vector<16x128xf32> -> vector<16x128xf32>
    %c8 = arith.constant 8 : index
    %c0_35 = arith.constant 0 : index
    %86 = vector.load %arg1[%c8, %c0_35] : memref<15x256xf32, #tpu.memory_space<vmem>>, vector<1x128xf32>
    %87 = vector.broadcast %86 : vector<1x128xf32> to vector<16x128xf32>
    %88 = arith.addf %85, %87 : vector<16x128xf32>
    %cst_36 = arith.constant dense<0.000000e+00> : vector<128xf32>
    %89 = vector.multi_reduction <add>, %88, %cst_36 [0] : vector<16x128xf32> to vector<128xf32>
    %90 = vector.shape_cast %89 : vector<128xf32> to vector<1x128xf32>
    %cst_37 = arith.constant 6.250000e-02 : f32
    %91 = vector.broadcast %cst_37 : f32 to vector<1x128xf32>
    %92 = arith.mulf %90, %91 : vector<1x128xf32>
    %93 = vector.broadcast %92 : vector<1x128xf32> to vector<16x128xf32>
    %94 = arith.subf %88, %93 : vector<16x128xf32>
    %95 = arith.mulf %94, %94 : vector<16x128xf32>
    %cst_38 = arith.constant dense<0.000000e+00> : vector<128xf32>
    %96 = vector.multi_reduction <add>, %95, %cst_38 [0] : vector<16x128xf32> to vector<128xf32>
    %97 = vector.shape_cast %96 : vector<128xf32> to vector<1x128xf32>
    %cst_39 = arith.constant 6.250000e-02 : f32
    %98 = vector.broadcast %cst_39 : f32 to vector<1x128xf32>
    %99 = arith.mulf %97, %98 : vector<1x128xf32>
    %cst_40 = arith.constant 9.99999974E-6 : f32
    %100 = vector.broadcast %cst_40 : f32 to vector<1x128xf32>
    %101 = arith.addf %99, %100 : vector<1x128xf32>
    %102 = math.rsqrt %101 : vector<1x128xf32>
    %103 = vector.broadcast %102 : vector<1x128xf32> to vector<16x128xf32>
    %104 = arith.mulf %94, %103 : vector<16x128xf32>
    %c9 = arith.constant 9 : index
    %c0_41 = arith.constant 0 : index
    %105 = vector.load %arg1[%c9, %c0_41] : memref<15x256xf32, #tpu.memory_space<vmem>>, vector<1x128xf32>
    %106 = vector.broadcast %105 : vector<1x128xf32> to vector<16x128xf32>
    %107 = arith.mulf %104, %106 : vector<16x128xf32>
    %c10 = arith.constant 10 : index
    %c0_42 = arith.constant 0 : index
    %108 = vector.load %arg1[%c10, %c0_42] : memref<15x256xf32, #tpu.memory_space<vmem>>, vector<1x128xf32>
    %109 = vector.broadcast %108 : vector<1x128xf32> to vector<16x128xf32>
    %110 = arith.addf %107, %109 : vector<16x128xf32>
    %cst_43 = arith.constant 0.000000e+00 : f32
    %111 = vector.broadcast %cst_43 : f32 to vector<16x128xf32>
    %112 = arith.maximumf %110, %111 : vector<16x128xf32>
    %113 = arith.truncf %112 : vector<16x128xf32> to vector<16x128xbf16>
    %c0_44 = arith.constant 0 : index
    %c0_45 = arith.constant 0 : index
    %114 = vector.load %arg5[%c0_44, %c0_45] : memref<128x128xbf16, #tpu.memory_space<vmem>>, vector<128x128xbf16>
    %cst_46 = arith.constant dense<0.000000e+00> : vector<16x128xf32>
    %115 = tpu.matmul %113, %114, %cst_46 {dimension_numbers = #tpu.dot_dimension_numbers<[1], [0], [0], [1], [0, 0, 1, 1], [], []>} : vector<16x128xbf16>, vector<128x128xbf16>, vector<16x128xf32> -> vector<16x128xf32>
    %c11 = arith.constant 11 : index
    %c0_47 = arith.constant 0 : index
    %116 = vector.load %arg1[%c11, %c0_47] : memref<15x256xf32, #tpu.memory_space<vmem>>, vector<1x128xf32>
    %117 = vector.broadcast %116 : vector<1x128xf32> to vector<16x128xf32>
    %118 = arith.addf %115, %117 : vector<16x128xf32>
    %cst_48 = arith.constant dense<0.000000e+00> : vector<128xf32>
    %119 = vector.multi_reduction <add>, %118, %cst_48 [0] : vector<16x128xf32> to vector<128xf32>
    %120 = vector.shape_cast %119 : vector<128xf32> to vector<1x128xf32>
    %cst_49 = arith.constant 6.250000e-02 : f32
    %121 = vector.broadcast %cst_49 : f32 to vector<1x128xf32>
    %122 = arith.mulf %120, %121 : vector<1x128xf32>
    %123 = vector.broadcast %122 : vector<1x128xf32> to vector<16x128xf32>
    %124 = arith.subf %118, %123 : vector<16x128xf32>
    %125 = arith.mulf %124, %124 : vector<16x128xf32>
    %cst_50 = arith.constant dense<0.000000e+00> : vector<128xf32>
    %126 = vector.multi_reduction <add>, %125, %cst_50 [0] : vector<16x128xf32> to vector<128xf32>
    %127 = vector.shape_cast %126 : vector<128xf32> to vector<1x128xf32>
    %cst_51 = arith.constant 6.250000e-02 : f32
    %128 = vector.broadcast %cst_51 : f32 to vector<1x128xf32>
    %129 = arith.mulf %127, %128 : vector<1x128xf32>
    %cst_52 = arith.constant 9.99999974E-6 : f32
    %130 = vector.broadcast %cst_52 : f32 to vector<1x128xf32>
    %131 = arith.addf %129, %130 : vector<1x128xf32>
    %132 = math.rsqrt %131 : vector<1x128xf32>
    %133 = vector.broadcast %132 : vector<1x128xf32> to vector<16x128xf32>
    %134 = arith.mulf %124, %133 : vector<16x128xf32>
    %c12 = arith.constant 12 : index
    %c0_53 = arith.constant 0 : index
    %135 = vector.load %arg1[%c12, %c0_53] : memref<15x256xf32, #tpu.memory_space<vmem>>, vector<1x128xf32>
    %136 = vector.broadcast %135 : vector<1x128xf32> to vector<16x128xf32>
    %137 = arith.mulf %134, %136 : vector<16x128xf32>
    %c13 = arith.constant 13 : index
    %c0_54 = arith.constant 0 : index
    %138 = vector.load %arg1[%c13, %c0_54] : memref<15x256xf32, #tpu.memory_space<vmem>>, vector<1x128xf32>
    %139 = vector.broadcast %138 : vector<1x128xf32> to vector<16x128xf32>
    %140 = arith.addf %137, %139 : vector<16x128xf32>
    %cst_55 = arith.constant 0.000000e+00 : f32
    %141 = vector.broadcast %cst_55 : f32 to vector<16x128xf32>
    %142 = arith.maximumf %140, %141 : vector<16x128xf32>
    %143 = arith.truncf %142 : vector<16x128xf32> to vector<16x128xbf16>
    %c0_56 = arith.constant 0 : index
    %c0_57 = arith.constant 0 : index
    %144 = vector.load %arg6[%c0_56, %c0_57] : memref<128x128xbf16, #tpu.memory_space<vmem>>, vector<128x128xbf16>
    %cst_58 = arith.constant dense<0.000000e+00> : vector<16x128xf32>
    %145 = tpu.matmul %143, %144, %cst_58 {dimension_numbers = #tpu.dot_dimension_numbers<[1], [0], [0], [1], [0, 0, 1, 1], [], []>} : vector<16x128xbf16>, vector<128x128xbf16>, vector<16x128xf32> -> vector<16x128xf32>
    %c14 = arith.constant 14 : index
    %c0_59 = arith.constant 0 : index
    %146 = vector.load %arg1[%c14, %c0_59] : memref<15x256xf32, #tpu.memory_space<vmem>>, vector<1x128xf32>
    %147 = vector.broadcast %146 : vector<1x128xf32> to vector<16x128xf32>
    %148 = arith.addf %145, %147 : vector<16x128xf32>
    %cst_60 = arith.constant 0.000000e+00 : f32
    %149 = vector.broadcast %cst_60 : f32 to vector<16x128xf32>
    %150 = arith.maximumf %148, %149 : vector<16x128xf32>
    %c0_61 = arith.constant 0 : index
    %c0_62 = arith.constant 0 : index
    %151 = vector.load %arg7[%c0_61, %c0_62] : memref<16x128xf32, #tpu.memory_space<vmem>>, vector<16x128xf32>
    tpu.vector_store %arg7[%c0_61, %c0_62], %150 {strides = array<i32>} : memref<16x128xf32, #tpu.memory_space<vmem>>, vector<16x128xf32>,
    return
  }
}

</mosaic_0001>

<llo_original>
// kernel: dqn_forward.1
$region0: #{dqn_forward.1}
  #allocation0 [shape = 'u32[]', space=smem, size = 0x4, offset = 0x4, fixed_abs, tag = 'smem constant byte address 0x4 - core index']
  #allocation1 [shape = 'u32[144,128]{1,0:T(1,128)}', space=vmem, size = 0x12000, scoped, tag = 'internal scratch']
  %s0 = inlined_call_operand.vmem [shape: f32[16,128], index: 0, kind: input, shape index: {}]
  %s1 = inlined_call_operand.vmem [shape: f32[15,256], index: 1, kind: input, shape index: {}]
  %s2 = inlined_call_operand.hbm [shape: bf16[128,256], index: 2, kind: input, shape index: {}]
  %s3 = inlined_call_operand.hbm [shape: bf16[256,256], index: 3, kind: input, shape index: {}]
  %s4 = inlined_call_operand.hbm [shape: bf16[256,128], index: 4, kind: input, shape index: {}]
  %s5 = inlined_call_operand.hbm [shape: bf16[128,128], index: 5, kind: input, shape index: {}]
  %s6 = inlined_call_operand.hbm [shape: bf16[128,128], index: 6, kind: input, shape index: {}]
  %s7 = inlined_call_operand.vmem [shape: f32[16,128], index: 7, kind: output, shape index: {}]
  %s8 = sld [smem:[#allocation0]]
  $region58: #{dqn_forward.1} parent=0
    _
  %s10 = ssub.s32 1, %s8
  %s11 = scalar_select 0, %s10, %s8
  $region1: #{dqn_forward.1} parent=0
    #allocation2 [shape = 'u8[65536]{0}', space=vmem, size = 0x10000, scoped, tag = 'input window, operand 2, single buffered']
    #allocation3 [shape = 's32[1]{0}', space=sflag, size = 0x4, scoped, tag = 'scoped memory for dqn_forward.1']
    #allocation4 [shape = 'u8[131072]{0}', space=vmem, size = 0x20000, scoped, tag = 'input window, operand 3, single buffered']
    #allocation5 [shape = 's32[1]{0}', space=sflag, size = 0x4, scoped, tag = 'scoped memory for dqn_forward.1']
    #allocation6 [shape = 'u8[65536]{0}', space=vmem, size = 0x10000, scoped, tag = 'input window, operand 4, single buffered']
    #allocation7 [shape = 'u8[32768]{0}', space=vmem, size = 0x8000, scoped, tag = 'input window, operand 5, single buffered']
    #allocation8 [shape = 's32[1]{0}', space=sflag, size = 0x4, scoped, tag = 'scoped memory for dqn_forward.1']
    #allocation9 [shape = 'u8[32768]{0}', space=vmem, size = 0x8000, scoped, tag = 'input window, operand 6, single buffered']
    %12 = vsyncpa [#allocation3], 0
    %13 = vsyncpa [#allocation5], 0
    %14 = vsyncpa [#allocation8], 0
    // Predicated region
    $region2: #{dqn_forward.1} parent=1 // pred_check
      _
    $region3: #{dqn_forward.1} parent=1 // pred_check_branch
      %16 = sbr.rel (0) target = $region5
    $region4: #{dqn_forward.1} parent=1 // pred_region
      _
    $region5: #{dqn_forward.1} parent=1 // pred_fallthru
      _
    // Predicated region
    $region6: #{dqn_forward.1} parent=1 // pred_check
      _
    $region7: #{dqn_forward.1} parent=1 // pred_check_branch
      %18 = sbr.rel (0) target = $region9
    $region8: #{dqn_forward.1} parent=1 // pred_region
      _
    $region9: #{dqn_forward.1} parent=1 // pred_fallthru
      _
    // Predicated region
    $region10: #{dqn_forward.1} parent=1 // pred_check
      _
    $region11: #{dqn_forward.1} parent=1 // pred_check_branch
      %20 = sbr.rel (0) target = $region13
    $region12: #{dqn_forward.1} parent=1 // pred_region
      %s22 = ssub.s32 2048, 2048
      %23 = vsyncadd [#allocation3], %s22
      %s24 = sshll.u32 [#allocation2], 4
      %s25 = int_to_ptr.vmem [resolvable:$true] %s24
      %30 = dma.hbm_to_vmem [thread:$0]  %s2, 2048, %s25, [#allocation3], 128, 128, 8
    $region13: #{dqn_forward.1} parent=1 // pred_fallthru
      _
    // Predicated region
    $region14: #{dqn_forward.1} parent=1 // pred_check
      _
    $region15: #{dqn_forward.1} parent=1 // pred_check_branch
      %32 = sbr.rel (0) target = $region17
    $region16: #{dqn_forward.1} parent=1 // pred_region
      %s34 = ssub.s32 4096, 4096
      %35 = vsyncadd [#allocation5], %s34
      %s36 = sshll.u32 [#allocation4], 4
      %s37 = int_to_ptr.vmem [resolvable:$true] %s36
      %42 = dma.hbm_to_vmem [thread:$0]  %s3, 4096, %s37, [#allocation5], 128, 128, 8
    $region17: #{dqn_forward.1} parent=1 // pred_fallthru
      _
    // Predicated region
    $region18: #{dqn_forward.1} parent=1 // pred_check
      _
    $region19: #{dqn_forward.1} parent=1 // pred_check_branch
      %44 = sbr.rel (0) target = $region21
    $region20: #{dqn_forward.1} parent=1 // pred_region
      %s46 = ssub.s32 2048, 2048
      %47 = vsyncadd [#allocation5], %s46
      %s48 = sshll.u32 [#allocation6], 4
      %s49 = int_to_ptr.vmem [resolvable:$true] %s48
      %54 = dma.hbm_to_vmem [thread:$0]  %s4, 2048, %s49, [#allocation5], 64, 64, 4
    $region21: #{dqn_forward.1} parent=1 // pred_fallthru
      _
    // Predicated region
    $region22: #{dqn_forward.1} parent=1 // pred_check
      _
    $region23: #{dqn_forward.1} parent=1 // pred_check_branch
      %56 = sbr.rel (0) target = $region25
    $region24: #{dqn_forward.1} parent=1 // pred_region
      %s58 = ssub.s32 1024, 1024
      %59 = vsyncadd [#allocation8], %s58
      %s60 = sshll.u32 [#allocation7], 4
      %s61 = int_to_ptr.vmem [resolvable:$true] %s60
      %66 = dma.hbm_to_vmem [thread:$0]  %s5, 1024, %s61, [#allocation8], 64, 64, 4
    $region25: #{dqn_forward.1} parent=1 // pred_fallthru
      _
    // Predicated region
    $region26: #{dqn_forward.1} parent=1 // pred_check
      _
    $region27: #{dqn_forward.1} parent=1 // pred_check_branch
      %68 = sbr.rel (0) target = $region29
    $region28: #{dqn_forward.1} parent=1 // pred_region
      %s70 = ssub.s32 1024, 1024
      %71 = vsyncadd [#allocation8], %s70
      %s72 = sshll.u32 [#allocation9], 4
      %s73 = int_to_ptr.vmem [resolvable:$true] %s72
      %78 = dma.hbm_to_vmem [thread:$0]  %s6, 1024, %s73, [#allocation8], 64, 64, 4
    $region29: #{dqn_forward.1} parent=1 // pred_fallthru
      _
    // Predicated region
    $region30: #{dqn_forward.1} parent=1 // pred_check
      _
    $region31: #{dqn_forward.1} parent=1 // pred_check_branch
      %80 = sbr.rel (0) target = $region33
    $region32: #{dqn_forward.1} parent=1 // pred_region
      %81 = dma.done [#allocation3], 2048
    $region33: #{dqn_forward.1} parent=1 // pred_fallthru
      _
    // Predicated region
    $region34: #{dqn_forward.1} parent=1 // pred_check
      _
    $region35: #{dqn_forward.1} parent=1 // pred_check_branch
      %83 = sbr.rel (0) target = $region37
    $region36: #{dqn_forward.1} parent=1 // pred_region
      %84 = dma.done [#allocation5], 4096
    $region37: #{dqn_forward.1} parent=1 // pred_fallthru
      _
    // Predicated region
    $region38: #{dqn_forward.1} parent=1 // pred_check
      _
    $region39: #{dqn_forward.1} parent=1 // pred_check_branch
      %86 = sbr.rel (0) target = $region41
    $region40: #{dqn_forward.1} parent=1 // pred_region
      %87 = dma.done [#allocation5], 2048
    $region41: #{dqn_forward.1} parent=1 // pred_fallthru
      _
    // Predicated region
    $region42: #{dqn_forward.1} parent=1 // pred_check
      _
    $region43: #{dqn_forward.1} parent=1 // pred_check_branch
      %89 = sbr.rel (0) target = $region45
    $region44: #{dqn_forward.1} parent=1 // pred_region
      %90 = dma.done [#allocation8], 1024
    $region45: #{dqn_forward.1} parent=1 // pred_fallthru
      _
    // Predicated region
    $region46: #{dqn_forward.1} parent=1 // pred_check
      _
    $region47: #{dqn_forward.1} parent=1 // pred_check_branch
      %92 = sbr.rel (0) target = $region49
    $region48: #{dqn_forward.1} parent=1 // pred_region
      %93 = dma.done [#allocation8], 1024
    $region49: #{dqn_forward.1} parent=1 // pred_fallthru
      _
    %v95 = vld [vmem:[%s0] sm:$0xff]
    %v96 = vld [vmem:[%s0 + $0x8] sm:$0xff]
    %v97 = vadd.f32 %v95, %v96
    %v98 = vrot.slane %v97, 4
    %v99 = vadd.f32 %v97, %v98
    %v100 = vrot.slane %v99, 2
    %v101 = vadd.f32 %v99, %v100
    %v102 = vrot.slane %v101, 1
    %v103 = vadd.f32 %v101, %v102
    %v104 = vmul.f32 %v103, 0.0625
    %v105 = vsub.f32 %v95, %v104
    %v106 = vsub.f32 %v96, %v104
    %v107 = vmul.f32 %v105, %v105
    %v108 = vmul.f32 %v106, %v106
    %v109 = vadd.f32 %v107, %v108
    %v110 = vrot.slane %v109, 4
    %v111 = vadd.f32 %v109, %v110
    %v112 = vrot.slane %v111, 2
    %v113 = vadd.f32 %v111, %v112
    %v114 = vrot.slane %v113, 1
    %v115 = vadd.f32 %v113, %v114
    %v116 = vmul.f32 %v115, 0.0625
    %v117 = vadd.f32 %v116, 1e-05
    %v118 = vrsqrt.pop %v117
    %v119 = vmul.f32 %v105, %v118
    %v120 = vmul.f32 %v106, %v118
    %v121 = vld [vmem:[%s1] ss:$0 sm:$0xff]
    %v122 = vmul.f32 %v119, %v121
    %v123 = vmul.f32 %v120, %v121
    %v124 = vld [vmem:[%s1 + $0x1] ss:$0 sm:$0xff]
    %v125 = vadd.f32 %v122, %v124
    %v126 = vadd.f32 %v123, %v124
    %v127 = vpack.c.bf16 %v126, %v125
    %v128 = vld [vmem:[#allocation2] sm:$0xff]
    %v129 = vld [vmem:[#allocation2 + $0x8] sm:$0xff]
    %v130 = vld [vmem:[#allocation2 + $0x10] sm:$0xff]
    %v131 = vld [vmem:[#allocation2 + $0x18] sm:$0xff]
    %v132 = vld [vmem:[#allocation2 + $0x20] sm:$0xff]
    %v133 = vld [vmem:[#allocation2 + $0x28] sm:$0xff]
    %v134 = vld [vmem:[#allocation2 + $0x30] sm:$0xff]
    %v135 = vld [vmem:[#allocation2 + $0x38] sm:$0xff]
    %v136 = vld [vmem:[#allocation2 + $0x40] sm:$0xff]
    %v137 = vld [vmem:[#allocation2 + $0x48] sm:$0xff]
    %v138 = vld [vmem:[#allocation2 + $0x50] sm:$0xff]
    %v139 = vld [vmem:[#allocation2 + $0x58] sm:$0xff]
    %v140 = vld [vmem:[#allocation2 + $0x60] sm:$0xff]
    %v141 = vld [vmem:[#allocation2 + $0x68] sm:$0xff]
    %v142 = vld [vmem:[#allocation2 + $0x70] sm:$0xff]
    %v143 = vld [vmem:[#allocation2 + $0x78] sm:$0xff]
    %s144 = scalar_lea.vmem %s1, 2
    %v145 = vld [vmem:[%s144] ss:$8 sm:$0x3]
    %v147 = vlaneseq
    %v148 = vshrl.u32 %v147, 7
    %v149 = vsub.s32 0, %v148
    %v150 = vrot.slane %v145, %v149
    %v151 = vlaneseq
    %v152 = vshrl.u32 %v151, 7
    %v153 = vsub.s32 1, %v152
    %v154 = vrot.slane %v145, %v153
    %v173 = vunpack.c.l.b16 %v128
    %v174 = vunpack.c.h.b16 %v128
    %v175 = vunpack.c.l.b16 %v129
    %v176 = vunpack.c.h.b16 %v129
    %v177 = vunpack.c.l.b16 %v130
    %v178 = vunpack.c.h.b16 %v130
    %v179 = vunpack.c.l.b16 %v131
    %v180 = vunpack.c.h.b16 %v131
    %v181 = vunpack.c.l.b16 %v132
    %v182 = vunpack.c.h.b16 %v132
    %v183 = vunpack.c.l.b16 %v133
    %v184 = vunpack.c.h.b16 %v133
    %v185 = vunpack.c.l.b16 %v134
    %v186 = vunpack.c.h.b16 %v134
    %v187 = vunpack.c.l.b16 %v135
    %v188 = vunpack.c.h.b16 %v135
    %v189 = vunpack.c.l.b16 %v136
    %v190 = vunpack.c.h.b16 %v136
    %v191 = vunpack.c.l.b16 %v137
    %v192 = vunpack.c.h.b16 %v137
    %v193 = vunpack.c.l.b16 %v138
    %v194 = vunpack.c.h.b16 %v138
    %v195 = vunpack.c.l.b16 %v139
    %v196 = vunpack.c.h.b16 %v139
    %v197 = vunpack.c.l.b16 %v140
    %v198 = vunpack.c.h.b16 %v140
    %v199 = vunpack.c.l.b16 %v141
    %v200 = vunpack.c.h.b16 %v141
    %v201 = vunpack.c.l.b16 %v142
    %v202 = vunpack.c.h.b16 %v142
    %v203 = vunpack.c.l.b16 %v143
    %v204 = vunpack.c.h.b16 %v143
    %v205 = vpack.c.b16 %v175, %v173
    %v206 = vpack.c.b16 %v176, %v174
    %v207 = vpack.c.b16 %v179, %v177
    %v208 = vpack.c.b16 %v180, %v178
    %v209 = vpack.c.b16 %v183, %v181
    %v210 = vpack.c.b16 %v184, %v182
    %v211 = vpack.c.b16 %v187, %v185
    %v212 = vpack.c.b16 %v188, %v186
    %v213 = vpack.c.b16 %v191, %v189
    %v214 = vpack.c.b16 %v192, %v190
    %v215 = vpack.c.b16 %v195, %v193
    %v216 = vpack.c.b16 %v196, %v194
    %v217 = vpack.c.b16 %v199, %v197
    %v218 = vpack.c.b16 %v200, %v198
    %v219 = vpack.c.b16 %v203, %v201
    %v220 = vpack.c.b16 %v204, %v202
    %237 = vmatprep.subr.bf16.mxu0 %v206
    %238 = vmatpush1.bf16.msra.mxu0 %v205
    %239 = vmatprep.subr.bf16.mxu0 %v208
    %240 = vmatpush1.bf16.msra.mxu0 %v207
    %241 = vmatprep.subr.bf16.mxu0 %v210
    %242 = vmatpush1.bf16.msra.mxu0 %v209
    %243 = vmatprep.subr.bf16.mxu0 %v212
    %244 = vmatpush1.bf16.msra.mxu0 %v211
    %245 = vmatprep.subr.bf16.mxu0 %v214
    %246 = vmatpush1.bf16.msra.mxu0 %v213
    %247 = vmatprep.subr.bf16.mxu0 %v216
    %248 = vmatpush1.bf16.msra.mxu0 %v215
    %249 = vmatprep.subr.bf16.mxu0 %v218
    %250 = vmatpush1.bf16.msra.mxu0 %v217
    %251 = vmatprep.subr.bf16.mxu0 %v220
    %252 = vmatpush1.bf16.msra.mxu0 %v219
    %253 = vmatprep.subr.bf16.mxu0 0
    %254 = vmatpush1.bf16.msra.mxu0 0
    %255 = vmatprep.subr.bf16.mxu0 0
    %256 = vmatpush1.bf16.msra.mxu0 0
    %257 = vmatprep.subr.bf16.mxu0 0
    %258 = vmatpush1.bf16.msra.mxu0 0
    %259 = vmatprep.subr.bf16.mxu0 0
    %260 = vmatpush1.bf16.msra.mxu0 0
    %261 = vmatprep.subr.bf16.mxu0 0
    %262 = vmatpush1.bf16.msra.mxu0 0
    %263 = vmatprep.subr.bf16.mxu0 0
    %264 = vmatpush1.bf16.msra.mxu0 0
    %265 = vmatprep.subr.bf16.mxu0 0
    %266 = vmatpush1.bf16.msra.mxu0 0
    %267 = vmatprep.subr.bf16.mxu0 0
    %268 = vmatpush1.bf16.msra.mxu0 0
    %269 = vmatprep.mubr.bf16.mxu0 0
    %270 = vmatmul.mubr.bf16.gmra.mrb[0].mxu0 %v127
    %v271 = vpop.f32.mrb[0].mxu0
    %v272 = vadd.f32 %v150, %v271
    %v273 = vpop.f32.mrb[0].mxu0
    %v274 = vadd.f32 %v154, %v273
    %v275 = vpop.f32.mrb[0].mxu0
    %v276 = vadd.f32 %v150, %v275
    %v277 = vpop.f32.mrb[0].mxu0
    %v278 = vadd.f32 %v154, %v277
    %279 = vdwg.mxu0
    %v280 = vadd.f32 %v272, %v276
    %v281 = vrot.slane %v280, 4
    %v282 = vadd.f32 %v280, %v281
    %v283 = vrot.slane %v282, 2
    %v284 = vadd.f32 %v282, %v283
    %v285 = vrot.slane %v284, 1
    %v286 = vadd.f32 %v284, %v285
    %v287 = vadd.f32 %v274, %v278
    %v288 = vrot.slane %v287, 4
    %v289 = vadd.f32 %v287, %v288
    %v290 = vrot.slane %v289, 2
    %v291 = vadd.f32 %v289, %v290
    %v292 = vrot.slane %v291, 1
    %v293 = vadd.f32 %v291, %v292
    %v294 = vmul.f32 %v286, 0.0625
    %v295 = vmul.f32 %v293, 0.0625
    %v296 = vsub.f32 %v272, %v294
    %v297 = vsub.f32 %v274, %v295
    %v298 = vsub.f32 %v276, %v294
    %v299 = vsub.f32 %v278, %v295
    %v300 = vmul.f32 %v296, %v296
    %v301 = vmul.f32 %v297, %v297
    %v302 = vmul.f32 %v298, %v298
    %v303 = vmul.f32 %v299, %v299
    %v304 = vadd.f32 %v300, %v302
    %v305 = vrot.slane %v304, 4
    %v306 = vadd.f32 %v304, %v305
    %v307 = vrot.slane %v306, 2
    %v308 = vadd.f32 %v306, %v307
    %v309 = vrot.slane %v308, 1
    %v310 = vadd.f32 %v308, %v309
    %v311 = vadd.f32 %v301, %v303
    %v312 = vrot.slane %v311, 4
    %v313 = vadd.f32 %v311, %v312
    %v314 = vrot.slane %v313, 2
    %v315 = vadd.f32 %v313, %v314
    %v316 = vrot.slane %v315, 1
    %v317 = vadd.f32 %v315, %v316
    %v318 = vmul.f32 %v310, 0.0625
    %v319 = vmul.f32 %v317, 0.0625
    %v320 = vadd.f32 %v318, 1e-05
    %v321 = vadd.f32 %v319, 1e-05
    %v322 = vrsqrt.pop %v320
    %v323 = vrsqrt.pop %v321
    %v324 = vmul.f32 %v296, %v322
    %v325 = vmul.f32 %v297, %v323
    %v326 = vmul.f32 %v298, %v322
    %v327 = vmul.f32 %v299, %v323
    %s328 = scalar_lea.vmem %s1, 3
    %v329 = vld [vmem:[%s328] ss:$8 sm:$0x3]
    %v331 = vlaneseq
    %v332 = vshrl.u32 %v331, 7
    %v333 = vsub.s32 0, %v332
    %v334 = vrot.slane %v329, %v333
    %v335 = vlaneseq
    %v336 = vshrl.u32 %v335, 7
    %v337 = vsub.s32 1, %v336
    %v338 = vrot.slane %v329, %v337
    %v341 = vmul.f32 %v324, %v334
    %v342 = vmul.f32 %v325, %v338
    %v343 = vmul.f32 %v326, %v334
    %v344 = vmul.f32 %v327, %v338
    %s345 = scalar_lea.vmem %s1, 4
    %v346 = vld [vmem:[%s345] ss:$8 sm:$0x3]
    %v348 = vlaneseq
    %v349 = vshrl.u32 %v348, 7
    %v350 = vsub.s32 0, %v349
    %v351 = vrot.slane %v346, %v350
    %v352 = vlaneseq
    %v353 = vshrl.u32 %v352, 7
    %v354 = vsub.s32 1, %v353
    %v355 = vrot.slane %v346, %v354
    %v358 = vadd.f32 %v341, %v351
    %v359 = vadd.f32 %v342, %v355
    %v360 = vadd.f32 %v343, %v351
    %v361 = vadd.f32 %v344, %v355
    %v362 = vmax.f32 %v358, 0.0
    %v363 = vmax.f32 %v359, 0.0
    %v364 = vmax.f32 %v360, 0.0
    %v365 = vmax.f32 %v361, 0.0
    %v366 = vpack.c.bf16 %v364, %v362
    %v367 = vpack.c.bf16 %v365, %v363
    %v368 = vld [vmem:[#allocation4] sm:$0xff]
    %v369 = vld [vmem:[#allocation4 + $0x8] sm:$0xff]
    %v370 = vld [vmem:[#allocation4 + $0x10] sm:$0xff]
    %v371 = vld [vmem:[#allocation4 + $0x18] sm:$0xff]
    %v372 = vld [vmem:[#allocation4 + $0x20] sm:$0xff]
    %v373 = vld [vmem:[#allocation4 + $0x28] sm:$0xff]
    %v374 = vld [vmem:[#allocation4 + $0x30] sm:$0xff]
    %v375 = vld [vmem:[#allocation4 + $0x38] sm:$0xff]
    %v376 = vld [vmem:[#allocation4 + $0x40] sm:$0xff]
    %v377 = vld [vmem:[#allocation4 + $0x48] sm:$0xff]
    %v378 = vld [vmem:[#allocation4 + $0x50] sm:$0xff]
    %v379 = vld [vmem:[#allocation4 + $0x58] sm:$0xff]
    %v380 = vld [vmem:[#allocation4 + $0x60] sm:$0xff]
    %v381 = vld [vmem:[#allocation4 + $0x68] sm:$0xff]
    %v382 = vld [vmem:[#allocation4 + $0x70] sm:$0xff]
    %v383 = vld [vmem:[#allocation4 + $0x78] sm:$0xff]
    %v384 = vld [vmem:[#allocation4 + $0x80] sm:$0xff]
    %v385 = vld [vmem:[#allocation4 + $0x88] sm:$0xff]
    %v386 = vld [vmem:[#allocation4 + $0x90] sm:$0xff]
    %v387 = vld [vmem:[#allocation4 + $0x98] sm:$0xff]
    %v388 = vld [vmem:[#allocation4 + $0xa0] sm:$0xff]
    %v389 = vld [vmem:[#allocation4 + $0xa8] sm:$0xff]
    %v390 = vld [vmem:[#allocation4 + $0xb0] sm:$0xff]
    %v391 = vld [vmem:[#allocation4 + $0xb8] sm:$0xff]
    %v392 = vld [vmem:[#allocation4 + $0xc0] sm:$0xff]
    %v393 = vld [vmem:[#allocation4 + $0xc8] sm:$0xff]
    %v394 = vld [vmem:[#allocation4 + $0xd0] sm:$0xff]
    %v395 = vld [vmem:[#allocation4 + $0xd8] sm:$0xff]
    %v396 = vld [vmem:[#allocation4 + $0xe0] sm:$0xff]
    %v397 = vld [vmem:[#allocation4 + $0xe8] sm:$0xff]
    %v398 = vld [vmem:[#allocation4 + $0xf0] sm:$0xff]
    %v399 = vld [vmem:[#allocation4 + $0xf8] sm:$0xff]
    %s400 = scalar_lea.vmem %s1, 5
    %v401 = vld [vmem:[%s400] ss:$8 sm:$0x3]
    %v403 = vlaneseq
    %v404 = vshrl.u32 %v403, 7
    %v405 = vsub.s32 0, %v404
    %v406 = vrot.slane %v401, %v405
    %v407 = vlaneseq
    %v408 = vshrl.u32 %v407, 7
    %v409 = vsub.s32 1, %v408
    %v410 = vrot.slane %v401, %v409
    %v445 = vunpack.c.l.b16 %v368
    %v446 = vunpack.c.h.b16 %v368
    %v447 = vunpack.c.l.b16 %v369
    %v448 = vunpack.c.h.b16 %v369
    %v449 = vunpack.c.l.b16 %v370
    %v450 = vunpack.c.h.b16 %v370
    %v451 = vunpack.c.l.b16 %v371
    %v452 = vunpack.c.h.b16 %v371
    %v453 = vunpack.c.l.b16 %v372
    %v454 = vunpack.c.h.b16 %v372
    %v455 = vunpack.c.l.b16 %v373
    %v456 = vunpack.c.h.b16 %v373
    %v457 = vunpack.c.l.b16 %v374
    %v458 = vunpack.c.h.b16 %v374
    %v459 = vunpack.c.l.b16 %v375
    %v460 = vunpack.c.h.b16 %v375
    %v461 = vunpack.c.l.b16 %v376
    %v462 = vunpack.c.h.b16 %v376
    %v463 = vunpack.c.l.b16 %v377
    %v464 = vunpack.c.h.b16 %v377
    %v465 = vunpack.c.l.b16 %v378
    %v466 = vunpack.c.h.b16 %v378
    %v467 = vunpack.c.l.b16 %v379
    %v468 = vunpack.c.h.b16 %v379
    %v469 = vunpack.c.l.b16 %v380
    %v470 = vunpack.c.h.b16 %v380
    %v471 = vunpack.c.l.b16 %v381
    %v472 = vunpack.c.h.b16 %v381
    %v473 = vunpack.c.l.b16 %v382
    %v474 = vunpack.c.h.b16 %v382
    %v475 = vunpack.c.l.b16 %v383
    %v476 = vunpack.c.h.b16 %v383
    %v477 = vunpack.c.l.b16 %v384
    %v478 = vunpack.c.h.b16 %v384
    %v479 = vunpack.c.l.b16 %v385
    %v480 = vunpack.c.h.b16 %v385
    %v481 = vunpack.c.l.b16 %v386
    %v482 = vunpack.c.h.b16 %v386
    %v483 = vunpack.c.l.b16 %v387
    %v484 = vunpack.c.h.b16 %v387
    %v485 = vunpack.c.l.b16 %v388
    %v486 = vunpack.c.h.b16 %v388
    %v487 = vunpack.c.l.b16 %v389
    %v488 = vunpack.c.h.b16 %v389
    %v489 = vunpack.c.l.b16 %v390
    %v490 = vunpack.c.h.b16 %v390
    %v491 = vunpack.c.l.b16 %v391
    %v492 = vunpack.c.h.b16 %v391
    %v493 = vunpack.c.l.b16 %v392
    %v494 = vunpack.c.h.b16 %v392
    %v495 = vunpack.c.l.b16 %v393
    %v496 = vunpack.c.h.b16 %v393
    %v497 = vunpack.c.l.b16 %v394
    %v498 = vunpack.c.h.b16 %v394
    %v499 = vunpack.c.l.b16 %v395
    %v500 = vunpack.c.h.b16 %v395
    %v501 = vunpack.c.l.b16 %v396
    %v502 = vunpack.c.h.b16 %v396
    %v503 = vunpack.c.l.b16 %v397
    %v504 = vunpack.c.h.b16 %v397
    %v505 = vunpack.c.l.b16 %v398
    %v506 = vunpack.c.h.b16 %v398
    %v507 = vunpack.c.l.b16 %v399
    %v508 = vunpack.c.h.b16 %v399
    %v509 = vpack.c.b16 %v447, %v445
    %v510 = vpack.c.b16 %v448, %v446
    %v511 = vpack.c.b16 %v451, %v449
    %v512 = vpack.c.b16 %v452, %v450
    %v513 = vpack.c.b16 %v455, %v453
    %v514 = vpack.c.b16 %v456, %v454
    %v515 = vpack.c.b16 %v459, %v457
    %v516 = vpack.c.b16 %v460, %v458
    %v517 = vpack.c.b16 %v463, %v461
    %v518 = vpack.c.b16 %v464, %v462
    %v519 = vpack.c.b16 %v467, %v465
    %v520 = vpack.c.b16 %v468, %v466
    %v521 = vpack.c.b16 %v471, %v469
    %v522 = vpack.c.b16 %v472, %v470
    %v523 = vpack.c.b16 %v475, %v473
    %v524 = vpack.c.b16 %v476, %v474
    %v525 = vpack.c.b16 %v479, %v477
    %v526 = vpack.c.b16 %v480, %v478
    %v527 = vpack.c.b16 %v483, %v481
    %v528 = vpack.c.b16 %v484, %v482
    %v529 = vpack.c.b16 %v487, %v485
    %v530 = vpack.c.b16 %v488, %v486
    %v531 = vpack.c.b16 %v491, %v489
    %v532 = vpack.c.b16 %v492, %v490
    %v533 = vpack.c.b16 %v495, %v493
    %v534 = vpack.c.b16 %v496, %v494
    %v535 = vpack.c.b16 %v499, %v497
    %v536 = vpack.c.b16 %v500, %v498
    %v537 = vpack.c.b16 %v503, %v501
    %v538 = vpack.c.b16 %v504, %v502
    %v539 = vpack.c.b16 %v507, %v505
    %v540 = vpack.c.b16 %v508, %v506
    %573 = vmatprep.subr.bf16.mxu0 %v510
    %574 = vmatpush1.bf16.msra.mxu0 %v509
    %575 = vmatprep.subr.bf16.mxu0 %v512
    %576 = vmatpush1.bf16.msra.mxu0 %v511
    %577 = vmatprep.subr.bf16.mxu0 %v514
    %578 = vmatpush1.bf16.msra.mxu0 %v513
    %579 = vmatprep.subr.bf16.mxu0 %v516
    %580 = vmatpush1.bf16.msra.mxu0 %v515
    %581 = vmatprep.subr.bf16.mxu0 %v518
    %582 = vmatpush1.bf16.msra.mxu0 %v517
    %583 = vmatprep.subr.bf16.mxu0 %v520
    %584 = vmatpush1.bf16.msra.mxu0 %v519
    %585 = vmatprep.subr.bf16.mxu0 %v522
    %586 = vmatpush1.bf16.msra.mxu0 %v521
    %587 = vmatprep.subr.bf16.mxu0 %v524
    %588 = vmatpush1.bf16.msra.mxu0 %v523
    %589 = vmatprep.subr.bf16.mxu0 %v526
    %590 = vmatpush1.bf16.msra.mxu0 %v525
    %591 = vmatprep.subr.bf16.mxu0 %v528
    %592 = vmatpush1.bf16.msra.mxu0 %v527
    %593 = vmatprep.subr.bf16.mxu0 %v530
    %594 = vmatpush1.bf16.msra.mxu0 %v529
    %595 = vmatprep.subr.bf16.mxu0 %v532
    %596 = vmatpush1.bf16.msra.mxu0 %v531
    %597 = vmatprep.subr.bf16.mxu0 %v534
    %598 = vmatpush1.bf16.msra.mxu0 %v533
    %599 = vmatprep.subr.bf16.mxu0 %v536
    %600 = vmatpush1.bf16.msra.mxu0 %v535
    %601 = vmatprep.subr.bf16.mxu0 %v538
    %602 = vmatpush1.bf16.msra.mxu0 %v537
    %603 = vmatprep.subr.bf16.mxu0 %v540
    %604 = vmatpush1.bf16.msra.mxu0 %v539
    %605 = vmatprep.mubr.bf16.mxu0 %v367
    %606 = vmatmul.mubr.bf16.gmra.mrb[0].mxu0 %v366
    %v607 = vpop.f32.mrb[0].mxu0
    %v608 = vadd.f32 %v406, %v607
    %v609 = vpop.f32.mrb[0].mxu0
    %v610 = vadd.f32 %v410, %v609
    %v611 = vpop.f32.mrb[0].mxu0
    %v612 = vadd.f32 %v406, %v611
    %v613 = vpop.f32.mrb[0].mxu0
    %v614 = vadd.f32 %v410, %v613
    %615 = vdwg.mxu0
    %v616 = vadd.f32 %v608, %v612
    %v617 = vrot.slane %v616, 4
    %v618 = vadd.f32 %v616, %v617
    %v619 = vrot.slane %v618, 2
    %v620 = vadd.f32 %v618, %v619
    %v621 = vrot.slane %v620, 1
    %v622 = vadd.f32 %v620, %v621
    %v623 = vadd.f32 %v610, %v614
    %v624 = vrot.slane %v623, 4
    %v625 = vadd.f32 %v623, %v624
    %v626 = vrot.slane %v625, 2
    %v627 = vadd.f32 %v625, %v626
    %v628 = vrot.slane %v627, 1
    %v629 = vadd.f32 %v627, %v628
    %v630 = vmul.f32 %v622, 0.0625
    %v631 = vmul.f32 %v629, 0.0625
    %v632 = vsub.f32 %v608, %v630
    %v633 = vsub.f32 %v610, %v631
    %v634 = vsub.f32 %v612, %v630
    %v635 = vsub.f32 %v614, %v631
    %v636 = vmul.f32 %v632, %v632
    %v637 = vmul.f32 %v633, %v633
    %v638 = vmul.f32 %v634, %v634
    %v639 = vmul.f32 %v635, %v635
    %v640 = vadd.f32 %v636, %v638
    %v641 = vrot.slane %v640, 4
    %v642 = vadd.f32 %v640, %v641
    %v643 = vrot.slane %v642, 2
    %v644 = vadd.f32 %v642, %v643
    %v645 = vrot.slane %v644, 1
    %v646 = vadd.f32 %v644, %v645
    %v647 = vadd.f32 %v637, %v639
    %v648 = vrot.slane %v647, 4
    %v649 = vadd.f32 %v647, %v648
    %v650 = vrot.slane %v649, 2
    %v651 = vadd.f32 %v649, %v650
    %v652 = vrot.slane %v651, 1
    %v653 = vadd.f32 %v651, %v652
    %v654 = vmul.f32 %v646, 0.0625
    %v655 = vmul.f32 %v653, 0.0625
    %v656 = vadd.f32 %v654, 1e-05
    %v657 = vadd.f32 %v655, 1e-05
    %v658 = vrsqrt.pop %v656
    %v659 = vrsqrt.pop %v657
    %v660 = vmul.f32 %v632, %v658
    %v661 = vmul.f32 %v633, %v659
    %v662 = vmul.f32 %v634, %v658
    %v663 = vmul.f32 %v635, %v659
    %s664 = scalar_lea.vmem %s1, 6
    %v665 = vld [vmem:[%s664] ss:$8 sm:$0x3]
    %v667 = vlaneseq
    %v668 = vshrl.u32 %v667, 7
    %v669 = vsub.s32 0, %v668
    %v670 = vrot.slane %v665, %v669
    %v671 = vlaneseq
    %v672 = vshrl.u32 %v671, 7
    %v673 = vsub.s32 1, %v672
    %v674 = vrot.slane %v665, %v673
    %v677 = vmul.f32 %v660, %v670
    %v678 = vmul.f32 %v661, %v674
    %v679 = vmul.f32 %v662, %v670
    %v680 = vmul.f32 %v663, %v674
    %s681 = scalar_lea.vmem %s1, 7
    %v682 = vld [vmem:[%s681] ss:$8 sm:$0x3]
    %v684 = vlaneseq
    %v685 = vshrl.u32 %v684, 7
    %v686 = vsub.s32 0, %v685
    %v687 = vrot.slane %v682, %v686
    %v688 = vlaneseq
    %v689 = vshrl.u32 %v688, 7
    %v690 = vsub.s32 1, %v689
    %v691 = vrot.slane %v682, %v690
    %v694 = vadd.f32 %v677, %v687
    %v695 = vadd.f32 %v678, %v691
    %v696 = vadd.f32 %v679, %v687
    %v697 = vadd.f32 %v680, %v691
    %v698 = vmax.f32 %v694, 0.0
    %v699 = vmax.f32 %v695, 0.0
    %v700 = vmax.f32 %v696, 0.0
    %v701 = vmax.f32 %v697, 0.0
    %v702 = vpack.c.bf16 %v700, %v698
    %v703 = vpack.c.bf16 %v701, %v699
    %v704 = vld [vmem:[#allocation6] sm:$0xf]
    %v705 = vld [vmem:[#allocation6 + $0x4] sm:$0xf]
    %v706 = vld [vmem:[#allocation6 + $0x8] sm:$0xf]
    %v707 = vld [vmem:[#allocation6 + $0xc] sm:$0xf]
    %v708 = vld [vmem:[#allocation6 + $0x10] sm:$0xf]
    %v709 = vld [vmem:[#allocation6 + $0x14] sm:$0xf]
    %v710 = vld [vmem:[#allocation6 + $0x18] sm:$0xf]
    %v711 = vld [vmem:[#allocation6 + $0x1c] sm:$0xf]
    %v712 = vld [vmem:[#allocation6 + $0x20] sm:$0xf]
    %v713 = vld [vmem:[#allocation6 + $0x24] sm:$0xf]
    %v714 = vld [vmem:[#allocation6 + $0x28] sm:$0xf]
    %v715 = vld [vmem:[#allocation6 + $0x2c] sm:$0xf]
    %v716 = vld [vmem:[#allocation6 + $0x30] sm:$0xf]
    %v717 = vld [vmem:[#allocation6 + $0x34] sm:$0xf]
    %v718 = vld [vmem:[#allocation6 + $0x38] sm:$0xf]
    %v719 = vld [vmem:[#allocation6 + $0x3c] sm:$0xf]
    %v720 = vld [vmem:[#allocation6 + $0x40] sm:$0xf]
    %v721 = vld [vmem:[#allocation6 + $0x44] sm:$0xf]
    %v722 = vld [vmem:[#allocation6 + $0x48] sm:$0xf]
    %v723 = vld [vmem:[#allocation6 + $0x4c] sm:$0xf]
    %v724 = vld [vmem:[#allocation6 + $0x50] sm:$0xf]
    %v725 = vld [vmem:[#allocation6 + $0x54] sm:$0xf]
    %v726 = vld [vmem:[#allocation6 + $0x58] sm:$0xf]
    %v727 = vld [vmem:[#allocation6 + $0x5c] sm:$0xf]
    %v728 = vld [vmem:[#allocation6 + $0x60] sm:$0xf]
    %v729 = vld [vmem:[#allocation6 + $0x64] sm:$0xf]
    %v730 = vld [vmem:[#allocation6 + $0x68] sm:$0xf]
    %v731 = vld [vmem:[#allocation6 + $0x6c] sm:$0xf]
    %v732 = vld [vmem:[#allocation6 + $0x70] sm:$0xf]
    %v733 = vld [vmem:[#allocation6 + $0x74] sm:$0xf]
    %v734 = vld [vmem:[#allocation6 + $0x78] sm:$0xf]
    %v735 = vld [vmem:[#allocation6 + $0x7c] sm:$0xf]
    %v736 = vld [vmem:[%s1 + $0x10] ss:$0 sm:$0xff]
    %v769 = vunpack.c.l.b16 %v704
    %v770 = vunpack.c.l.b16 %v705
    %v771 = vunpack.c.l.b16 %v706
    %v772 = vunpack.c.l.b16 %v707
    %v773 = vunpack.c.l.b16 %v708
    %v774 = vunpack.c.l.b16 %v709
    %v775 = vunpack.c.l.b16 %v710
    %v776 = vunpack.c.l.b16 %v711
    %v777 = vunpack.c.l.b16 %v712
    %v778 = vunpack.c.l.b16 %v713
    %v779 = vunpack.c.l.b16 %v714
    %v780 = vunpack.c.l.b16 %v715
    %v781 = vunpack.c.l.b16 %v716
    %v782 = vunpack.c.l.b16 %v717
    %v783 = vunpack.c.l.b16 %v718
    %v784 = vunpack.c.l.b16 %v719
    %v785 = vunpack.c.l.b16 %v720
    %v786 = vunpack.c.l.b16 %v721
    %v787 = vunpack.c.l.b16 %v722
    %v788 = vunpack.c.l.b16 %v723
    %v789 = vunpack.c.l.b16 %v724
    %v790 = vunpack.c.l.b16 %v725
    %v791 = vunpack.c.l.b16 %v726
    %v792 = vunpack.c.l.b16 %v727
    %v793 = vunpack.c.l.b16 %v728
    %v794 = vunpack.c.l.b16 %v729
    %v795 = vunpack.c.l.b16 %v730
    %v796 = vunpack.c.l.b16 %v731
    %v797 = vunpack.c.l.b16 %v732
    %v798 = vunpack.c.l.b16 %v733
    %v799 = vunpack.c.l.b16 %v734
    %v800 = vunpack.c.l.b16 %v735
    %v801 = vpack.c.b16 %v770, %v769
    %v802 = vpack.c.b16 %v772, %v771
    %v803 = vpack.c.b16 %v774, %v773
    %v804 = vpack.c.b16 %v776, %v775
    %v805 = vpack.c.b16 %v778, %v777
    %v806 = vpack.c.b16 %v780, %v779
    %v807 = vpack.c.b16 %v782, %v781
    %v808 = vpack.c.b16 %v784, %v783
    %v809 = vpack.c.b16 %v786, %v785
    %v810 = vpack.c.b16 %v788, %v787
    %v811 = vpack.c.b16 %v790, %v789
    %v812 = vpack.c.b16 %v792, %v791
    %v813 = vpack.c.b16 %v794, %v793
    %v814 = vpack.c.b16 %v796, %v795
    %v815 = vpack.c.b16 %v798, %v797
    %v816 = vpack.c.b16 %v800, %v799
    %833 = vmatprep.subr.bf16.mxu0 0
    %834 = vmatpush1.bf16.msra.mxu0 %v801
    %835 = vmatprep.subr.bf16.mxu0 0
    %836 = vmatpush1.bf16.msra.mxu0 %v802
    %837 = vmatprep.subr.bf16.mxu0 0
    %838 = vmatpush1.bf16.msra.mxu0 %v803
    %839 = vmatprep.subr.bf16.mxu0 0
    %840 = vmatpush1.bf16.msra.mxu0 %v804
    %841 = vmatprep.subr.bf16.mxu0 0
    %842 = vmatpush1.bf16.msra.mxu0 %v805
    %843 = vmatprep.subr.bf16.mxu0 0
    %844 = vmatpush1.bf16.msra.mxu0 %v806
    %845 = vmatprep.subr.bf16.mxu0 0
    %846 = vmatpush1.bf16.msra.mxu0 %v807
    %847 = vmatprep.subr.bf16.mxu0 0
    %848 = vmatpush1.bf16.msra.mxu0 %v808
    %849 = vmatprep.subr.bf16.mxu0 0
    %850 = vmatpush1.bf16.msra.mxu0 %v809
    %851 = vmatprep.subr.bf16.mxu0 0
    %852 = vmatpush1.bf16.msra.mxu0 %v810
    %853 = vmatprep.subr.bf16.mxu0 0
    %854 = vmatpush1.bf16.msra.mxu0 %v811
    %855 = vmatprep.subr.bf16.mxu0 0
    %856 = vmatpush1.bf16.msra.mxu0 %v812
    %857 = vmatprep.subr.bf16.mxu0 0
    %858 = vmatpush1.bf16.msra.mxu0 %v813
    %859 = vmatprep.subr.bf16.mxu0 0
    %860 = vmatpush1.bf16.msra.mxu0 %v814
    %861 = vmatprep.subr.bf16.mxu0 0
    %862 = vmatpush1.bf16.msra.mxu0 %v815
    %863 = vmatprep.subr.bf16.mxu0 0
    %864 = vmatpush1.bf16.msra.mxu0 %v816
    %865 = vmatprep.mubr.bf16.mxu0 %v703
    %866 = vmatmul.mubr.bf16.gmra.mrb[0].mxu0 %v702
    %v867 = vpop.f32.mrb[0].mxu0
    %v868 = vadd.f32 %v736, %v867
    %v869 = vpop.f32.mrb[0].mxu0
    %v870 = vpop.f32.mrb[0].mxu0
    %v871 = vadd.f32 %v736, %v870
    %v872 = vpop.f32.mrb[0].mxu0
    %873 = vdwg.mxu0
    %v874 = vadd.f32 %v868, %v871
    %v875 = vrot.slane %v874, 4
    %v876 = vadd.f32 %v874, %v875
    %v877 = vrot.slane %v876, 2
    %v878 = vadd.f32 %v876, %v877
    %v879 = vrot.slane %v878, 1
    %v880 = vadd.f32 %v878, %v879
    %v881 = vmul.f32 %v880, 0.0625
    %v882 = vsub.f32 %v868, %v881
    %v883 = vsub.f32 %v871, %v881
    %v884 = vmul.f32 %v882, %v882
    %v885 = vmul.f32 %v883, %v883
    %v886 = vadd.f32 %v884, %v885
    %v887 = vrot.slane %v886, 4
    %v888 = vadd.f32 %v886, %v887
    %v889 = vrot.slane %v888, 2
    %v890 = vadd.f32 %v888, %v889
    %v891 = vrot.slane %v890, 1
    %v892 = vadd.f32 %v890, %v891
    %v893 = vmul.f32 %v892, 0.0625
    %v894 = vadd.f32 %v893, 1e-05
    %v895 = vrsqrt.pop %v894
    %v896 = vmul.f32 %v882, %v895
    %v897 = vmul.f32 %v883, %v895
    %v898 = vld [vmem:[%s1 + $0x11] ss:$0 sm:$0xff]
    %v899 = vmul.f32 %v896, %v898
    %v900 = vmul.f32 %v897, %v898
    %v901 = vld [vmem:[%s1 + $0x12] ss:$0 sm:$0xff]
    %v902 = vadd.f32 %v899, %v901
    %v903 = vadd.f32 %v900, %v901
    %v904 = vmax.f32 %v902, 0.0
    %v905 = vmax.f32 %v903, 0.0
    %v906 = vpack.c.bf16 %v905, %v904
    %v907 = vld [vmem:[#allocation7] sm:$0xf]
    %v908 = vld [vmem:[#allocation7 + $0x4] sm:$0xf]
    %v909 = vld [vmem:[#allocation7 + $0x8] sm:$0xf]
    %v910 = vld [vmem:[#allocation7 + $0xc] sm:$0xf]
    %v911 = vld [vmem:[#allocation7 + $0x10] sm:$0xf]
    %v912 = vld [vmem:[#allocation7 + $0x14] sm:$0xf]
    %v913 = vld [vmem:[#allocation7 + $0x18] sm:$0xf]
    %v914 = vld [vmem:[#allocation7 + $0x1c] sm:$0xf]
    %v915 = vld [vmem:[#allocation7 + $0x20] sm:$0xf]
    %v916 = vld [vmem:[#allocation7 + $0x24] sm:$0xf]
    %v917 = vld [vmem:[#allocation7 + $0x28] sm:$0xf]
    %v918 = vld [vmem:[#allocation7 + $0x2c] sm:$0xf]
    %v919 = vld [vmem:[#allocation7 + $0x30] sm:$0xf]
    %v920 = vld [vmem:[#allocation7 + $0x34] sm:$0xf]
    %v921 = vld [vmem:[#allocation7 + $0x38] sm:$0xf]
    %v922 = vld [vmem:[#allocation7 + $0x3c] sm:$0xf]
    %v923 = vld [vmem:[%s1 + $0x13] ss:$0 sm:$0xff]
    %v940 = vunpack.c.l.b16 %v907
    %v941 = vunpack.c.l.b16 %v908
    %v942 = vunpack.c.l.b16 %v909
    %v943 = vunpack.c.l.b16 %v910
    %v944 = vunpack.c.l.b16 %v911
    %v945 = vunpack.c.l.b16 %v912
    %v946 = vunpack.c.l.b16 %v913
    %v947 = vunpack.c.l.b16 %v914
    %v948 = vunpack.c.l.b16 %v915
    %v949 = vunpack.c.l.b16 %v916
    %v950 = vunpack.c.l.b16 %v917
    %v951 = vunpack.c.l.b16 %v918
    %v952 = vunpack.c.l.b16 %v919
    %v953 = vunpack.c.l.b16 %v920
    %v954 = vunpack.c.l.b16 %v921
    %v955 = vunpack.c.l.b16 %v922
    %v956 = vpack.c.b16 %v941, %v940
    %v957 = vpack.c.b16 %v943, %v942
    %v958 = vpack.c.b16 %v945, %v944
    %v959 = vpack.c.b16 %v947, %v946
    %v960 = vpack.c.b16 %v949, %v948
    %v961 = vpack.c.b16 %v951, %v950
    %v962 = vpack.c.b16 %v953, %v952
    %v963 = vpack.c.b16 %v955, %v954
    %972 = vmatprep.subr.bf16.mxu0 0
    %973 = vmatpush1.bf16.msra.mxu0 %v956
    %974 = vmatprep.subr.bf16.mxu0 0
    %975 = vmatpush1.bf16.msra.mxu0 %v957
    %976 = vmatprep.subr.bf16.mxu0 0
    %977 = vmatpush1.bf16.msra.mxu0 %v958
    %978 = vmatprep.subr.bf16.mxu0 0
    %979 = vmatpush1.bf16.msra.mxu0 %v959
    %980 = vmatprep.subr.bf16.mxu0 0
    %981 = vmatpush1.bf16.msra.mxu0 %v960
    %982 = vmatprep.subr.bf16.mxu0 0
    %983 = vmatpush1.bf16.msra.mxu0 %v961
    %984 = vmatprep.subr.bf16.mxu0 0
    %985 = vmatpush1.bf16.msra.mxu0 %v962
    %986 = vmatprep.subr.bf16.mxu0 0
    %987 = vmatpush1.bf16.msra.mxu0 %v963
    %988 = vmatprep.subr.bf16.mxu0 0
    %989 = vmatpush1.bf16.msra.mxu0 0
    %990 = vmatprep.subr.bf16.mxu0 0
    %991 = vmatpush1.bf16.msra.mxu0 0
    %992 = vmatprep.subr.bf16.mxu0 0
    %993 = vmatpush1.bf16.msra.mxu0 0
    %994 = vmatprep.subr.bf16.mxu0 0
    %995 = vmatpush1.bf16.msra.mxu0 0
    %996 = vmatprep.subr.bf16.mxu0 0
    %997 = vmatpush1.bf16.msra.mxu0 0
    %998 = vmatprep.subr.bf16.mxu0 0
    %999 = vmatpush1.bf16.msra.mxu0 0
    %1000 = vmatprep.subr.bf16.mxu0 0
    %1001 = vmatpush1.bf16.msra.mxu0 0
    %1002 = vmatprep.subr.bf16.mxu0 0
    %1003 = vmatpush1.bf16.msra.mxu0 0
    %1004 = vmatprep.mubr.bf16.mxu0 0
    %1005 = vmatmul.mubr.bf16.gmra.mrb[0].mxu0 %v906
    %v1006 = vpop.f32.mrb[0].mxu0
    %v1007 = vadd.f32 %v923, %v1006
    %v1008 = vpop.f32.mrb[0].mxu0
    %v1009 = vpop.f32.mrb[0].mxu0
    %v1010 = vadd.f32 %v923, %v1009
    %v1011 = vpop.f32.mrb[0].mxu0
    %1012 = vdwg.mxu0
    %v1013 = vadd.f32 %v1007, %v1010
    %v1014 = vrot.slane %v1013, 4
    %v1015 = vadd.f32 %v1013, %v1014
    %v1016 = vrot.slane %v1015, 2
    %v1017 = vadd.f32 %v1015, %v1016
    %v1018 = vrot.slane %v1017, 1
    %v1019 = vadd.f32 %v1017, %v1018
    %v1020 = vmul.f32 %v1019, 0.0625
    %v1021 = vsub.f32 %v1007, %v1020
    %v1022 = vsub.f32 %v1010, %v1020
    %v1023 = vmul.f32 %v1021, %v1021
    %v1024 = vmul.f32 %v1022, %v1022
    %v1025 = vadd.f32 %v1023, %v1024
    %v1026 = vrot.slane %v1025, 4
    %v1027 = vadd.f32 %v1025, %v1026
    %v1028 = vrot.slane %v1027, 2
    %v1029 = vadd.f32 %v1027, %v1028
    %v1030 = vrot.slane %v1029, 1
    %v1031 = vadd.f32 %v1029, %v1030
    %v1032 = vmul.f32 %v1031, 0.0625
    %v1033 = vadd.f32 %v1032, 1e-05
    %v1034 = vrsqrt.pop %v1033
    %v1035 = vmul.f32 %v1021, %v1034
    %v1036 = vmul.f32 %v1022, %v1034
    %v1037 = vld [vmem:[%s1 + $0x14] ss:$0 sm:$0xff]
    %v1038 = vmul.f32 %v1035, %v1037
    %v1039 = vmul.f32 %v1036, %v1037
    %v1040 = vld [vmem:[%s1 + $0x15] ss:$0 sm:$0xff]
    %v1041 = vadd.f32 %v1038, %v1040
    %v1042 = vadd.f32 %v1039, %v1040
    %v1043 = vmax.f32 %v1041, 0.0
    %v1044 = vmax.f32 %v1042, 0.0
    %v1045 = vpack.c.bf16 %v1044, %v1043
    %v1046 = vld [vmem:[#allocation9] sm:$0xf]
    %v1047 = vld [vmem:[#allocation9 + $0x4] sm:$0xf]
    %v1048 = vld [vmem:[#allocation9 + $0x8] sm:$0xf]
    %v1049 = vld [vmem:[#allocation9 + $0xc] sm:$0xf]
    %v1050 = vld [vmem:[#allocation9 + $0x10] sm:$0xf]
    %v1051 = vld [vmem:[#allocation9 + $0x14] sm:$0xf]
    %v1052 = vld [vmem:[#allocation9 + $0x18] sm:$0xf]
    %v1053 = vld [vmem:[#allocation9 + $0x1c] sm:$0xf]
    %v1054 = vld [vmem:[#allocation9 + $0x20] sm:$0xf]
    %v1055 = vld [vmem:[#allocation9 + $0x24] sm:$0xf]
    %v1056 = vld [vmem:[#allocation9 + $0x28] sm:$0xf]
    %v1057 = vld [vmem:[#allocation9 + $0x2c] sm:$0xf]
    %v1058 = vld [vmem:[#allocation9 + $0x30] sm:$0xf]
    %v1059 = vld [vmem:[#allocation9 + $0x34] sm:$0xf]
    %v1060 = vld [vmem:[#allocation9 + $0x38] sm:$0xf]
    %v1061 = vld [vmem:[#allocation9 + $0x3c] sm:$0xf]
    %v1062 = vld [vmem:[%s1 + $0x16] ss:$0 sm:$0xff]
    %v1079 = vunpack.c.l.b16 %v1046
    %v1080 = vunpack.c.l.b16 %v1047
    %v1081 = vunpack.c.l.b16 %v1048
    %v1082 = vunpack.c.l.b16 %v1049
    %v1083 = vunpack.c.l.b16 %v1050
    %v1084 = vunpack.c.l.b16 %v1051
    %v1085 = vunpack.c.l.b16 %v1052
    %v1086 = vunpack.c.l.b16 %v1053
    %v1087 = vunpack.c.l.b16 %v1054
    %v1088 = vunpack.c.l.b16 %v1055
    %v1089 = vunpack.c.l.b16 %v1056
    %v1090 = vunpack.c.l.b16 %v1057
    %v1091 = vunpack.c.l.b16 %v1058
    %v1092 = vunpack.c.l.b16 %v1059
    %v1093 = vunpack.c.l.b16 %v1060
    %v1094 = vunpack.c.l.b16 %v1061
    %v1095 = vpack.c.b16 %v1080, %v1079
    %v1096 = vpack.c.b16 %v1082, %v1081
    %v1097 = vpack.c.b16 %v1084, %v1083
    %v1098 = vpack.c.b16 %v1086, %v1085
    %v1099 = vpack.c.b16 %v1088, %v1087
    %v1100 = vpack.c.b16 %v1090, %v1089
    %v1101 = vpack.c.b16 %v1092, %v1091
    %v1102 = vpack.c.b16 %v1094, %v1093
    %1111 = vmatprep.subr.bf16.mxu0 0
    %1112 = vmatpush1.bf16.msra.mxu0 %v1095
    %1113 = vmatprep.subr.bf16.mxu0 0
    %1114 = vmatpush1.bf16.msra.mxu0 %v1096
    %1115 = vmatprep.subr.bf16.mxu0 0
    %1116 = vmatpush1.bf16.msra.mxu0 %v1097
    %1117 = vmatprep.subr.bf16.mxu0 0
    %1118 = vmatpush1.bf16.msra.mxu0 %v1098
    %1119 = vmatprep.subr.bf16.mxu0 0
    %1120 = vmatpush1.bf16.msra.mxu0 %v1099
    %1121 = vmatprep.subr.bf16.mxu0 0
    %1122 = vmatpush1.bf16.msra.mxu0 %v1100
    %1123 = vmatprep.subr.bf16.mxu0 0
    %1124 = vmatpush1.bf16.msra.mxu0 %v1101
    %1125 = vmatprep.subr.bf16.mxu0 0
    %1126 = vmatpush1.bf16.msra.mxu0 %v1102
    %1127 = vmatprep.subr.bf16.mxu0 0
    %1128 = vmatpush1.bf16.msra.mxu0 0
    %1129 = vmatprep.subr.bf16.mxu0 0
    %1130 = vmatpush1.bf16.msra.mxu0 0
    %1131 = vmatprep.subr.bf16.mxu0 0
    %1132 = vmatpush1.bf16.msra.mxu0 0
    %1133 = vmatprep.subr.bf16.mxu0 0
    %1134 = vmatpush1.bf16.msra.mxu0 0
    %1135 = vmatprep.subr.bf16.mxu0 0
    %1136 = vmatpush1.bf16.msra.mxu0 0
    %1137 = vmatprep.subr.bf16.mxu0 0
    %1138 = vmatpush1.bf16.msra.mxu0 0
    %1139 = vmatprep.subr.bf16.mxu0 0
    %1140 = vmatpush1.bf16.msra.mxu0 0
    %1141 = vmatprep.subr.bf16.mxu0 0
    %1142 = vmatpush1.bf16.msra.mxu0 0
    %1143 = vmatprep.mubr.bf16.mxu0 0
    %1144 = vmatmul.mubr.bf16.gmra.mrb[0].mxu0 %v1045
    %v1145 = vpop.f32.mrb[0].mxu0
    %v1146 = vadd.f32 %v1062, %v1145
    %v1147 = vpop.f32.mrb[0].mxu0
    %v1148 = vpop.f32.mrb[0].mxu0
    %v1149 = vadd.f32 %v1062, %v1148
    %v1150 = vpop.f32.mrb[0].mxu0
    %1151 = vdwg.mxu0
    %v1152 = vmax.f32 %v1146, 0.0
    %v1153 = vmax.f32 %v1149, 0.0
    %1154 = vst [vmem:[%s7] sm:$0xff] %v1152
    %1155 = vst [vmem:[%s7 + $0x8] sm:$0xff] %v1153
    // Predicated region
    $region50: #{dqn_forward.1} parent=1 // pred_check
      _
    $region51: #{dqn_forward.1} parent=1 // pred_check_branch
      %1157 = sbr.rel (0) target = $region53
    $region52: #{dqn_forward.1} parent=1 // pred_region
      _
    $region53: #{dqn_forward.1} parent=1 // pred_fallthru
      _
    // Predicated region
    $region54: #{dqn_forward.1} parent=1 // pred_check
      _
    $region55: #{dqn_forward.1} parent=1 // pred_check_branch
      %1159 = sbr.rel (0) target = $region57
    $region56: #{dqn_forward.1} parent=1 // pred_region
      _
    $region57: #{dqn_forward.1} parent=1 // pred_fallthru
      _
    %1160 = vsyncpa [#allocation3], 1
    %1161 = vsyncpa [#allocation5], 1
    %1162 = vsyncpa [#allocation8], 1

</llo_original>
